<compile_context>
chip_gen: v5e
topology: v5e:2x2
jax: 0.10.0
libtpu: 0.0.40
codegen_flags: <defaults>
</compile_context>

<pallas_src>
from functools import partial

import jax
import jax.numpy as jnp
from jax.experimental import pallas as pl
from jax.experimental.pallas import tpu as pltpu

EPS = 1e-5
LANE = 128


def _round_up(n, m):
    return ((n + m - 1) // m) * m


def _bn_train_folded(y, gamma, beta):
    """Training-mode BatchNorm1d (biased variance, eps=1e-5).

    Single reduction pass: sum and sum-of-squares reduced side-by-side along
    the lane axis; affine folded into one multiply-add on the (B, dp) tensor.
    """
    b, dp = y.shape
    inv_b = 1.0 / b
    r = jnp.sum(jnp.concatenate([y, y * y], axis=1), axis=0, keepdims=True)
    mean = r[:, :dp] * inv_b
    var = jnp.maximum(r[:, dp:] * inv_b - mean * mean, 0.0)
    scale = gamma * jax.lax.rsqrt(var + EPS)
    shift = beta - mean * scale
    return y * scale + shift


def generator_kernel(noise_ref, w1_ref, w2_ref, w3_ref, bn_ref, out_ref):
    # Linear biases intentionally omitted: BN's mean subtraction cancels them.
    x = noise_ref[...]                      # already bf16, unpadded K
    bn = bn_ref[...]                        # (8, dp) f32: rows g1,be1,g2,be2,g3,be3

    # Layer 1: Linear -> BN -> tanh
    h = jnp.dot(x, w1_ref[...], preferred_element_type=jnp.float32)
    h = jnp.tanh(_bn_train_folded(h, bn[0:1, :], bn[1:2, :]))

    # Layer 2: Linear -> BN -> tanh
    h = jnp.dot(h.astype(jnp.bfloat16), w2_ref[...],
                preferred_element_type=jnp.float32)
    h = jnp.tanh(_bn_train_folded(h, bn[2:3, :], bn[3:4, :]))

    # Layer 3: Linear -> BN -> sigmoid
    h = jnp.dot(h.astype(jnp.bfloat16), w3_ref[...],
                preferred_element_type=jnp.float32)
    h = jax.nn.sigmoid(_bn_train_folded(h, bn[4:5, :], bn[5:6, :]))

    out_ref[...] = h                        # f32, lane-dense unmasked store


def prepare_params(params):
    """One-time preparation (hoisted out of the per-call path):
    pad output-feature axes to a lane multiple, cast weights to bf16, and pack
    the six BN vectors into a single (8, dp) f32 array."""
    n_noise, d = params["w1"].shape
    dp = _round_up(d, LANE)

    def pad2(a, rows, cols):
        return jnp.pad(a, ((0, rows - a.shape[0]), (0, cols - a.shape[1])))

    # Layer-1 contraction axis (n_noise) deliberately left unpadded.
    w1 = pad2(params["w1"], n_noise, dp).astype(jnp.bfloat16)
    w2 = pad2(params["w2"], dp, dp).astype(jnp.bfloat16)
    w3 = pad2(params["w3"], dp, dp).astype(jnp.bfloat16)

    bn = jnp.concatenate(
        [params["g1"], params["be1"],
         params["g2"], params["be2"],
         params["g3"], params["be3"],
         jnp.zeros((2, d), jnp.float32)], axis=0)          # (8, d)
    bn = jnp.pad(bn, ((0, 0), (0, dp - d)))                # (8, dp)

    return dict(w1=w1, w2=w2, w3=w3, bn=bn)


@partial(jax.jit, static_argnames="d")
def generator_forward(noise, prepped, *, d):
    """noise: (B, n_noise) f32.  prepped: dict from prepare_params.  d: out dim."""
    B = noise.shape[0]
    dp = prepped["w1"].shape[1]

    noise_bf = noise.astype(jnp.bfloat16)   # only per-call prep work

    vmem = pl.BlockSpec(memory_space=pltpu.MemorySpace.VMEM)

    # Single program: training-mode BN needs the whole batch for its
    # statistics, so the batch stays in one block (fits VMEM at these sizes).
    out_p = pl.pallas_call(
        generator_kernel,
        out_shape=jax.ShapeDtypeStruct((B, dp), jnp.float32),
        in_specs=[vmem] * 5,
        out_specs=vmem,
    )(noise_bf, prepped["w1"], prepped["w2"], prepped["w3"], prepped["bn"])

    # Drop padded (dead) feature columns.
    return out_p[:, :d]


def init_params(key, n_noise, d):
    """Deterministic synthetic parameters matching the PyTorch module shapes.
    Linear weights stored pre-transposed as (in_features, out_features).
    Biases / BN params stored as (1, d) rows."""
    ks = jax.random.split(key, 6)

    def lin(kw, kb, fan_in, fan_out):
        bound = 1.0 / jnp.sqrt(fan_in)
        w = jax.random.uniform(kw, (fan_in, fan_out), jnp.float32, -bound, bound)
        b = jax.random.uniform(kb, (1, fan_out), jnp.float32, -bound, bound)
        return w, b

    w1, b1 = lin(ks[0], ks[1], n_noise, d)
    w2, b2 = lin(ks[2], ks[3], d, d)
    w3, b3 = lin(ks[4], ks[5], d, d)

    ones = jnp.ones((1, d), jnp.float32)
    zeros = jnp.zeros((1, d), jnp.float32)
    return dict(
        w1=w1, b1=b1, g1=ones, be1=zeros,
        w2=w2, b2=b2, g2=ones, be2=zeros,
        w3=w3, b3=b3, g3=ones, be3=zeros,
    )


def generator_reference(noise, p, matmul_dtype=jnp.float32):
    """Pure-JAX reference of the PyTorch forward (train-mode BN, WITH biases,
    classic two-pass mean/var).  matmul_dtype lets us mirror the kernel's
    bf16 matmul inputs for a tight apples-to-apples check."""
    def bn(y, g, b):
        m = jnp.mean(y, axis=0, keepdims=True)
        v = jnp.mean((y - m) ** 2, axis=0, keepdims=True)
        return (y - m) * jax.lax.rsqrt(v + EPS) * g + b

    def mm(a, w):
        return jnp.dot(a.astype(matmul_dtype), w.astype(matmul_dtype),
                       preferred_element_type=jnp.float32)

    h = jnp.tanh(bn(mm(noise, p["w1"]) + p["b1"], p["g1"], p["be1"]))
    h = jnp.tanh(bn(mm(h, p["w2"]) + p["b2"], p["g2"], p["be2"]))
    h = jax.nn.sigmoid(bn(mm(h, p["w3"]) + p["b3"], p["g3"], p["be3"]))
    return h


if __name__ == "__main__":
    B, n_noise, d = 16, 16, 32

    key = jax.random.PRNGKey(0)
    k_noise, k_params = jax.random.split(key)
    noise = jax.random.normal(k_noise, (B, n_noise), jnp.float32)
    params = init_params(k_params, n_noise, d)

    prepped = prepare_params(params)        # one-time: pad + bf16 + pack BN
    out = jax.block_until_ready(generator_forward(noise, prepped, d=d))
    assert out.shape == (B, d)

    # (a) Tight check vs a JAX reference that mirrors the kernel's bf16 matmul
    #     inputs (proves bias-drop / folded one-pass BN / BN packing are exact).
    ref_bf16 = generator_reference(noise, params, matmul_dtype=jnp.bfloat16)
    assert jnp.allclose(out, ref_bf16, atol=5e-3, rtol=5e-3), "mismatch vs bf16 ref"

    # (b) Semantic check vs the exact f32 PyTorch math (bf16 matmul inputs =>
    #     looser tolerance).
    ref_f32 = generator_reference(noise, params, matmul_dtype=jnp.float32)
    assert jnp.allclose(out, ref_f32, atol=2.5e-2, rtol=2.5e-2), "mismatch vs f32 ref"

    print("KERNEL_OK")
</pallas_src>

<mosaic_0001>
module attributes {stable_mosaic.version = 11 : i64} {
  func.func @generator_kernel(%arg0: memref<16x16xbf16, #tpu.memory_space<vmem>>, %arg1: memref<16x128xbf16, #tpu.memory_space<vmem>>, %arg2: memref<128x128xbf16, #tpu.memory_space<vmem>>, %arg3: memref<128x128xbf16, #tpu.memory_space<vmem>>, %arg4: memref<8x128xf32, #tpu.memory_space<vmem>>, %arg5: memref<16x128xf32, #tpu.memory_space<vmem>>) attributes {dimension_semantics = [], scalar_prefetch = 0 : i64, scratch_operands = 0 : i64, tpu.core_type = #tpu.core_type<tc>} {
    %c0 = arith.constant 0 : index
    %c0_0 = arith.constant 0 : index
    %0 = vector.load %arg0[%c0, %c0_0] : memref<16x16xbf16, #tpu.memory_space<vmem>>, vector<16x16xbf16>
    %c0_1 = arith.constant 0 : index
    %c0_2 = arith.constant 0 : index
    %1 = vector.load %arg4[%c0_1, %c0_2] : memref<8x128xf32, #tpu.memory_space<vmem>>, vector<8x128xf32>
    %c0_3 = arith.constant 0 : index
    %c0_4 = arith.constant 0 : index
    %2 = vector.load %arg1[%c0_3, %c0_4] : memref<16x128xbf16, #tpu.memory_space<vmem>>, vector<16x128xbf16>
    %cst = arith.constant dense<0.000000e+00> : vector<16x128xf32>
    %3 = tpu.matmul %0, %2, %cst {dimension_numbers = #tpu.dot_dimension_numbers<[1], [0], [0], [1], [0, 0, 1, 1], [], []>} : vector<16x16xbf16>, vector<16x128xbf16>, vector<16x128xf32> -> vector<16x128xf32>
    %4 = vector.extract_strided_slice %1 {offsets = [0, 0], sizes = [1, 128], strides = [1, 1]} : vector<8x128xf32> to vector<1x128xf32>
    %5 = vector.extract_strided_slice %1 {offsets = [1, 0], sizes = [1, 128], strides = [1, 1]} : vector<8x128xf32> to vector<1x128xf32>
    %6 = arith.mulf %3, %3 : vector<16x128xf32>
    %7 = tpu.concatenate %3, %6 in 1 : vector<16x128xf32>, vector<16x128xf32> -> vector<16x256xf32>
    %cst_5 = arith.constant dense<0.000000e+00> : vector<256xf32>
    %8 = vector.multi_reduction <add>, %7, %cst_5 [0] : vector<16x256xf32> to vector<256xf32>
    %9 = vector.shape_cast %8 : vector<256xf32> to vector<1x256xf32>
    %10 = vector.extract_strided_slice %9 {offsets = [0, 0], sizes = [1, 128], strides = [1, 1]} : vector<1x256xf32> to vector<1x128xf32>
    %cst_6 = arith.constant 6.250000e-02 : f32
    %11 = vector.broadcast %cst_6 : f32 to vector<1x128xf32>
    %12 = arith.mulf %10, %11 : vector<1x128xf32>
    %13 = vector.extract_strided_slice %9 {offsets = [0, 128], sizes = [1, 128], strides = [1, 1]} : vector<1x256xf32> to vector<1x128xf32>
    %cst_7 = arith.constant 6.250000e-02 : f32
    %14 = vector.broadcast %cst_7 : f32 to vector<1x128xf32>
    %15 = arith.mulf %13, %14 : vector<1x128xf32>
    %16 = arith.mulf %12, %12 : vector<1x128xf32>
    %17 = arith.subf %15, %16 : vector<1x128xf32>
    %cst_8 = arith.constant 0.000000e+00 : f32
    %18 = vector.broadcast %cst_8 : f32 to vector<1x128xf32>
    %19 = arith.maximumf %17, %18 : vector<1x128xf32>
    %cst_9 = arith.constant 9.99999974E-6 : f32
    %20 = vector.broadcast %cst_9 : f32 to vector<1x128xf32>
    %21 = arith.addf %19, %20 : vector<1x128xf32>
    %22 = math.rsqrt %21 : vector<1x128xf32>
    %23 = arith.mulf %4, %22 : vector<1x128xf32>
    %24 = arith.mulf %12, %23 : vector<1x128xf32>
    %25 = arith.subf %5, %24 : vector<1x128xf32>
    %26 = vector.broadcast %23 : vector<1x128xf32> to vector<16x128xf32>
    %27 = arith.mulf %3, %26 : vector<16x128xf32>
    %28 = vector.broadcast %25 : vector<1x128xf32> to vector<16x128xf32>
    %29 = arith.addf %27, %28 : vector<16x128xf32>
    %30 = math.tanh %29 : vector<16x128xf32>
    %31 = arith.truncf %30 : vector<16x128xf32> to vector<16x128xbf16>
    %c0_10 = arith.constant 0 : index
    %c0_11 = arith.constant 0 : index
    %32 = vector.load %arg2[%c0_10, %c0_11] : memref<128x128xbf16, #tpu.memory_space<vmem>>, vector<128x128xbf16>
    %cst_12 = arith.constant dense<0.000000e+00> : vector<16x128xf32>
    %33 = tpu.matmul %31, %32, %cst_12 {dimension_numbers = #tpu.dot_dimension_numbers<[1], [0], [0], [1], [0, 0, 1, 1], [], []>} : vector<16x128xbf16>, vector<128x128xbf16>, vector<16x128xf32> -> vector<16x128xf32>
    %34 = vector.extract_strided_slice %1 {offsets = [2, 0], sizes = [1, 128], strides = [1, 1]} : vector<8x128xf32> to vector<1x128xf32>
    %35 = vector.extract_strided_slice %1 {offsets = [3, 0], sizes = [1, 128], strides = [1, 1]} : vector<8x128xf32> to vector<1x128xf32>
    %36 = arith.mulf %33, %33 : vector<16x128xf32>
    %37 = tpu.concatenate %33, %36 in 1 : vector<16x128xf32>, vector<16x128xf32> -> vector<16x256xf32>
    %cst_13 = arith.constant dense<0.000000e+00> : vector<256xf32>
    %38 = vector.multi_reduction <add>, %37, %cst_13 [0] : vector<16x256xf32> to vector<256xf32>
    %39 = vector.shape_cast %38 : vector<256xf32> to vector<1x256xf32>
    %40 = vector.extract_strided_slice %39 {offsets = [0, 0], sizes = [1, 128], strides = [1, 1]} : vector<1x256xf32> to vector<1x128xf32>
    %cst_14 = arith.constant 6.250000e-02 : f32
    %41 = vector.broadcast %cst_14 : f32 to vector<1x128xf32>
    %42 = arith.mulf %40, %41 : vector<1x128xf32>
    %43 = vector.extract_strided_slice %39 {offsets = [0, 128], sizes = [1, 128], strides = [1, 1]} : vector<1x256xf32> to vector<1x128xf32>
    %cst_15 = arith.constant 6.250000e-02 : f32
    %44 = vector.broadcast %cst_15 : f32 to vector<1x128xf32>
    %45 = arith.mulf %43, %44 : vector<1x128xf32>
    %46 = arith.mulf %42, %42 : vector<1x128xf32>
    %47 = arith.subf %45, %46 : vector<1x128xf32>
    %cst_16 = arith.constant 0.000000e+00 : f32
    %48 = vector.broadcast %cst_16 : f32 to vector<1x128xf32>
    %49 = arith.maximumf %47, %48 : vector<1x128xf32>
    %cst_17 = arith.constant 9.99999974E-6 : f32
    %50 = vector.broadcast %cst_17 : f32 to vector<1x128xf32>
    %51 = arith.addf %49, %50 : vector<1x128xf32>
    %52 = math.rsqrt %51 : vector<1x128xf32>
    %53 = arith.mulf %34, %52 : vector<1x128xf32>
    %54 = arith.mulf %42, %53 : vector<1x128xf32>
    %55 = arith.subf %35, %54 : vector<1x128xf32>
    %56 = vector.broadcast %53 : vector<1x128xf32> to vector<16x128xf32>
    %57 = arith.mulf %33, %56 : vector<16x128xf32>
    %58 = vector.broadcast %55 : vector<1x128xf32> to vector<16x128xf32>
    %59 = arith.addf %57, %58 : vector<16x128xf32>
    %60 = math.tanh %59 : vector<16x128xf32>
    %61 = arith.truncf %60 : vector<16x128xf32> to vector<16x128xbf16>
    %c0_18 = arith.constant 0 : index
    %c0_19 = arith.constant 0 : index
    %62 = vector.load %arg3[%c0_18, %c0_19] : memref<128x128xbf16, #tpu.memory_space<vmem>>, vector<128x128xbf16>
    %cst_20 = arith.constant dense<0.000000e+00> : vector<16x128xf32>
    %63 = tpu.matmul %61, %62, %cst_20 {dimension_numbers = #tpu.dot_dimension_numbers<[1], [0], [0], [1], [0, 0, 1, 1], [], []>} : vector<16x128xbf16>, vector<128x128xbf16>, vector<16x128xf32> -> vector<16x128xf32>
    %64 = vector.extract_strided_slice %1 {offsets = [4, 0], sizes = [1, 128], strides = [1, 1]} : vector<8x128xf32> to vector<1x128xf32>
    %65 = vector.extract_strided_slice %1 {offsets = [5, 0], sizes = [1, 128], strides = [1, 1]} : vector<8x128xf32> to vector<1x128xf32>
    %66 = arith.mulf %63, %63 : vector<16x128xf32>
    %67 = tpu.concatenate %63, %66 in 1 : vector<16x128xf32>, vector<16x128xf32> -> vector<16x256xf32>
    %cst_21 = arith.constant dense<0.000000e+00> : vector<256xf32>
    %68 = vector.multi_reduction <add>, %67, %cst_21 [0] : vector<16x256xf32> to vector<256xf32>
    %69 = vector.shape_cast %68 : vector<256xf32> to vector<1x256xf32>
    %70 = vector.extract_strided_slice %69 {offsets = [0, 0], sizes = [1, 128], strides = [1, 1]} : vector<1x256xf32> to vector<1x128xf32>
    %cst_22 = arith.constant 6.250000e-02 : f32
    %71 = vector.broadcast %cst_22 : f32 to vector<1x128xf32>
    %72 = arith.mulf %70, %71 : vector<1x128xf32>
    %73 = vector.extract_strided_slice %69 {offsets = [0, 128], sizes = [1, 128], strides = [1, 1]} : vector<1x256xf32> to vector<1x128xf32>
    %cst_23 = arith.constant 6.250000e-02 : f32
    %74 = vector.broadcast %cst_23 : f32 to vector<1x128xf32>
    %75 = arith.mulf %73, %74 : vector<1x128xf32>
    %76 = arith.mulf %72, %72 : vector<1x128xf32>
    %77 = arith.subf %75, %76 : vector<1x128xf32>
    %cst_24 = arith.constant 0.000000e+00 : f32
    %78 = vector.broadcast %cst_24 : f32 to vector<1x128xf32>
    %79 = arith.maximumf %77, %78 : vector<1x128xf32>
    %cst_25 = arith.constant 9.99999974E-6 : f32
    %80 = vector.broadcast %cst_25 : f32 to vector<1x128xf32>
    %81 = arith.addf %79, %80 : vector<1x128xf32>
    %82 = math.rsqrt %81 : vector<1x128xf32>
    %83 = arith.mulf %64, %82 : vector<1x128xf32>
    %84 = arith.mulf %72, %83 : vector<1x128xf32>
    %85 = arith.subf %65, %84 : vector<1x128xf32>
    %86 = vector.broadcast %83 : vector<1x128xf32> to vector<16x128xf32>
    %87 = arith.mulf %63, %86 : vector<16x128xf32>
    %88 = vector.broadcast %85 : vector<1x128xf32> to vector<16x128xf32>
    %89 = arith.addf %87, %88 : vector<16x128xf32>
    %90 = arith.negf %89 : vector<16x128xf32>
    %91 = math.exp %90 : vector<16x128xf32>
    %cst_26 = arith.constant 1.000000e+00 : f32
    %92 = vector.broadcast %cst_26 : f32 to vector<16x128xf32>
    %93 = arith.addf %92, %91 : vector<16x128xf32>
    %94 = arith.divf %92, %93 : vector<16x128xf32>
    %c0_27 = arith.constant 0 : index
    %c0_28 = arith.constant 0 : index
    %95 = vector.load %arg5[%c0_27, %c0_28] : memref<16x128xf32, #tpu.memory_space<vmem>>, vector<16x128xf32>
    tpu.vector_store %arg5[%c0_27, %c0_28], %94 {strides = array<i32>} : memref<16x128xf32, #tpu.memory_space<vmem>>, vector<16x128xf32>,
    return
  }
}

</mosaic_0001>

<llo_original>
// kernel: generator_forward.1
$region0: #{generator_forward.1}
  #allocation0 [shape = 'u32[]', space=smem, size = 0x4, offset = 0x4, fixed_abs, tag = 'smem constant byte address 0x4 - core index']
  #allocation1 [shape = 'u32[72,128]{1,0:T(1,128)}', space=vmem, size = 0x9000, scoped, tag = 'internal scratch']
  %s0 = inlined_call_operand.vmem [shape: bf16[16,16], index: 0, kind: input, shape index: {}]
  %s1 = inlined_call_operand.vmem [shape: bf16[16,128], index: 1, kind: input, shape index: {}]
  %s2 = inlined_call_operand.hbm [shape: bf16[128,128], index: 2, kind: input, shape index: {}]
  %s3 = inlined_call_operand.hbm [shape: bf16[128,128], index: 3, kind: input, shape index: {}]
  %s4 = inlined_call_operand.vmem [shape: f32[8,128], index: 4, kind: input, shape index: {}]
  %s5 = inlined_call_operand.hbm [shape: f32[16,128], index: 5, kind: output, shape index: {}]
  %s6 = sld [smem:[#allocation0]]
  $region38: #{generator_forward.1} parent=0
    _
  %s8 = ssub.s32 1, %s6
  %s9 = scalar_select 0, %s8, %s6
  $region1: #{generator_forward.1} parent=0
    #allocation2 [shape = 'u8[32768]{0}', space=vmem, size = 0x8000, scoped, tag = 'input window, operand 2, single buffered']
    #allocation3 [shape = 's32[1]{0}', space=sflag, size = 0x4, scoped, tag = 'scoped memory for generator_forward.1']
    #allocation4 [shape = 's32[1]{0}', space=sflag, size = 0x4, scoped, tag = 'scoped memory for generator_forward.1']
    #allocation5 [shape = 'u8[32768]{0}', space=vmem, size = 0x8000, scoped, tag = 'input window, operand 3, single buffered']
    #allocation6 [shape = 's32[1]{0}', space=sflag, size = 0x4, scoped, tag = 'scoped memory for generator_forward.1']
    #allocation7 [shape = 'u8[8192]{0}', space=vmem, size = 0x2000, scoped, tag = 'output window, operand 0, single buffered']
    %10 = vsyncpa [#allocation3], 0
    %11 = vsyncpa [#allocation6], 0
    %12 = vsyncpa [#allocation4], 0
    // Predicated region
    $region2: #{generator_forward.1} parent=1 // pred_check
      _
    $region3: #{generator_forward.1} parent=1 // pred_check_branch
      %14 = sbr.rel (0) target = $region5
    $region4: #{generator_forward.1} parent=1 // pred_region
      _
    $region5: #{generator_forward.1} parent=1 // pred_fallthru
      _
    // Predicated region
    $region6: #{generator_forward.1} parent=1 // pred_check
      _
    $region7: #{generator_forward.1} parent=1 // pred_check_branch
      %16 = sbr.rel (0) target = $region9
    $region8: #{generator_forward.1} parent=1 // pred_region
      _
    $region9: #{generator_forward.1} parent=1 // pred_fallthru
      _
    // Predicated region
    $region10: #{generator_forward.1} parent=1 // pred_check
      _
    $region11: #{generator_forward.1} parent=1 // pred_check_branch
      %18 = sbr.rel (0) target = $region13
    $region12: #{generator_forward.1} parent=1 // pred_region
      %20 = vsyncadd [#allocation3], 0
      %s21 = sshll.u32 %s2, 4
      %s22 = int_to_ptr.hbm [resolvable:$true] %s21
      %s23 = sshll.u32 [#allocation2], 4
      %s24 = int_to_ptr.vmem [resolvable:$true] %s23
      %29 = dma.hbm_to_vmem [thread:$0]  %s22, 1024, %s24, [#allocation3], 64, 64, 4
    $region13: #{generator_forward.1} parent=1 // pred_fallthru
      _
    // Predicated region
    $region14: #{generator_forward.1} parent=1 // pred_check
      _
    $region15: #{generator_forward.1} parent=1 // pred_check_branch
      %31 = sbr.rel (0) target = $region17
    $region16: #{generator_forward.1} parent=1 // pred_region
      %33 = vsyncadd [#allocation6], 0
      %s34 = sshll.u32 %s3, 4
      %s35 = int_to_ptr.hbm [resolvable:$true] %s34
      %s36 = sshll.u32 [#allocation5], 4
      %s37 = int_to_ptr.vmem [resolvable:$true] %s36
      %42 = dma.hbm_to_vmem [thread:$0]  %s35, 1024, %s37, [#allocation6], 64, 64, 4
    $region17: #{generator_forward.1} parent=1 // pred_fallthru
      _
    // Predicated region
    $region18: #{generator_forward.1} parent=1 // pred_check
      _
    $region19: #{generator_forward.1} parent=1 // pred_check_branch
      %44 = sbr.rel (0) target = $region21
    $region20: #{generator_forward.1} parent=1 // pred_region
      _
    $region21: #{generator_forward.1} parent=1 // pred_fallthru
      _
    // Predicated region
    $region22: #{generator_forward.1} parent=1 // pred_check
      _
    $region23: #{generator_forward.1} parent=1 // pred_check_branch
      %46 = sbr.rel (0) target = $region25
    $region24: #{generator_forward.1} parent=1 // pred_region
      %48 = dma.done [#allocation3], 1024
    $region25: #{generator_forward.1} parent=1 // pred_fallthru
      _
    // Predicated region
    $region26: #{generator_forward.1} parent=1 // pred_check
      _
    $region27: #{generator_forward.1} parent=1 // pred_check_branch
      %50 = sbr.rel (0) target = $region29
    $region28: #{generator_forward.1} parent=1 // pred_region
      %52 = dma.done [#allocation6], 1024
    $region29: #{generator_forward.1} parent=1 // pred_fallthru
      _
    %v54 = vld [vmem:[%s0] sm:$0xf]
    %v55 = vld [vmem:[%s0 + $0x4] sm:$0xf]
    %v56 = vld [vmem:[%s4] sm:$0xff]
    %v57 = vld [vmem:[%s1] sm:$0xf]
    %v58 = vld [vmem:[%s1 + $0x4] sm:$0xf]
    %v61 = vunpack.c.l.b16 %v54
    %v62 = vunpack.c.l.b16 %v55
    %v63 = vpack.c.b16 %v62, %v61
    %v66 = vunpack.c.l.b16 %v57
    %v67 = vunpack.c.l.b16 %v58
    %v68 = vpack.c.b16 %v67, %v66
    %vm70 = vcmask 130048
    %v72 = vsel %vm70, %v63, 0
    %74 = vmatpush.bf16.msra.mxu0 0
    %75 = vmatpush.bf16.msra.mxu0 0
    %76 = vmatpush.bf16.msra.mxu0 0
    %77 = vmatpush.bf16.msra.mxu0 0
    %78 = vmatpush.bf16.msra.mxu0 0
    %79 = vmatpush.bf16.msra.mxu0 0
    %80 = vmatpush.bf16.msra.mxu0 0
    %81 = vmatpush.bf16.msra.mxu0 %v68
    %82 = vmatmul.bf16.gmra.mxu0 %v72
    %v83 = vpop.f32.mrf.mxu0
    %v84 = vadd.f32 0.0, %v83
    %v85 = vpop.f32.mrf.mxu0
    %v86 = vadd.f32 0.0, %v85
    %87 = vdwg.mxu0
    %v88 = vmul.f32 %v84, %v84
    %v89 = vmul.f32 %v86, %v86
    %v90 = vadd.f32 %v84, %v86
    %v91 = vrot.slane %v90, 4
    %v92 = vadd.f32 %v90, %v91
    %v93 = vrot.slane %v92, 2
    %v94 = vadd.f32 %v92, %v93
    %v95 = vrot.slane %v94, 1
    %v96 = vadd.f32 %v94, %v95
    %v97 = vadd.f32 %v88, %v89
    %v98 = vrot.slane %v97, 4
    %v99 = vadd.f32 %v97, %v98
    %v100 = vrot.slane %v99, 2
    %v101 = vadd.f32 %v99, %v100
    %v102 = vrot.slane %v101, 1
    %v103 = vadd.f32 %v101, %v102
    %v104 = vmul.f32 %v96, 0.0625
    %v105 = vmul.f32 %v103, 0.0625
    %v106 = vmul.f32 %v104, %v104
    %v107 = vsub.f32 %v105, %v106
    %v108 = vmax.f32 %v107, 0.0
    %v109 = vadd.f32 %v108, 1e-05
    %v110 = vrsqrt.pop %v109
    %v111 = vmul.f32 %v110, %v109
    %v112 = vmul.f32 %v111, %v110
    %v113 = vmul.f32 0.5, %v112
    %v114 = vsub.f32 1.5, %v113
    %v115 = vmul.f32 %v110, %v114
    %vm116 = vweird.f32 %v109
    %vm117 = vweird.f32 %v110
    %vm118 = vmor %vm116, %vm117
    %v119 = vsel %vm118, %v110, %v115
    %v120 = vmul.f32 %v56, %v119
    %v121 = vmul.f32 %v104, %v120
    %v123 = vrot.slane %v121, 7
    %v125 = vsub.f32 %v56, %v123
    %v126 = vperm.slane %v120, 0
    %v127 = vmul.f32 %v84, %v126
    %v128 = vmul.f32 %v86, %v126
    %v129 = vperm.slane %v125, 1
    %v130 = vadd.f32 %v127, %v129
    %v131 = vadd.f32 %v128, %v129
    %v132 = vtanh.pop %v130
    %v133 = vtanh.pop %v131
    %v134 = vpack.c.bf16 %v133, %v132
    %v135 = vld [vmem:[#allocation2] sm:$0xf]
    %v136 = vld [vmem:[#allocation2 + $0x4] sm:$0xf]
    %v137 = vld [vmem:[#allocation2 + $0x8] sm:$0xf]
    %v138 = vld [vmem:[#allocation2 + $0xc] sm:$0xf]
    %v139 = vld [vmem:[#allocation2 + $0x10] sm:$0xf]
    %v140 = vld [vmem:[#allocation2 + $0x14] sm:$0xf]
    %v141 = vld [vmem:[#allocation2 + $0x18] sm:$0xf]
    %v142 = vld [vmem:[#allocation2 + $0x1c] sm:$0xf]
    %v143 = vld [vmem:[#allocation2 + $0x20] sm:$0xf]
    %v144 = vld [vmem:[#allocation2 + $0x24] sm:$0xf]
    %v145 = vld [vmem:[#allocation2 + $0x28] sm:$0xf]
    %v146 = vld [vmem:[#allocation2 + $0x2c] sm:$0xf]
    %v147 = vld [vmem:[#allocation2 + $0x30] sm:$0xf]
    %v148 = vld [vmem:[#allocation2 + $0x34] sm:$0xf]
    %v149 = vld [vmem:[#allocation2 + $0x38] sm:$0xf]
    %v150 = vld [vmem:[#allocation2 + $0x3c] sm:$0xf]
    %v167 = vunpack.c.l.b16 %v135
    %v168 = vunpack.c.l.b16 %v136
    %v169 = vunpack.c.l.b16 %v137
    %v170 = vunpack.c.l.b16 %v138
    %v171 = vunpack.c.l.b16 %v139
    %v172 = vunpack.c.l.b16 %v140
    %v173 = vunpack.c.l.b16 %v141
    %v174 = vunpack.c.l.b16 %v142
    %v175 = vunpack.c.l.b16 %v143
    %v176 = vunpack.c.l.b16 %v144
    %v177 = vunpack.c.l.b16 %v145
    %v178 = vunpack.c.l.b16 %v146
    %v179 = vunpack.c.l.b16 %v147
    %v180 = vunpack.c.l.b16 %v148
    %v181 = vunpack.c.l.b16 %v149
    %v182 = vunpack.c.l.b16 %v150
    %v183 = vpack.c.b16 %v168, %v167
    %v184 = vpack.c.b16 %v170, %v169
    %v185 = vpack.c.b16 %v172, %v171
    %v186 = vpack.c.b16 %v174, %v173
    %v187 = vpack.c.b16 %v176, %v175
    %v188 = vpack.c.b16 %v178, %v177
    %v189 = vpack.c.b16 %v180, %v179
    %v190 = vpack.c.b16 %v182, %v181
    %199 = vmatpush.bf16.msra.mxu0 %v190
    %200 = vmatpush.bf16.msra.mxu0 %v189
    %201 = vmatpush.bf16.msra.mxu0 %v188
    %202 = vmatpush.bf16.msra.mxu0 %v187
    %203 = vmatpush.bf16.msra.mxu0 %v186
    %204 = vmatpush.bf16.msra.mxu0 %v185
    %205 = vmatpush.bf16.msra.mxu0 %v184
    %206 = vmatpush.bf16.msra.mxu0 %v183
    %207 = vmatmul.bf16.gmra.mxu0 %v134
    %v208 = vpop.f32.mrf.mxu0
    %v209 = vadd.f32 0.0, %v208
    %v210 = vpop.f32.mrf.mxu0
    %v211 = vadd.f32 0.0, %v210
    %212 = vdwg.mxu0
    %v213 = vmul.f32 %v209, %v209
    %v214 = vmul.f32 %v211, %v211
    %v215 = vadd.f32 %v209, %v211
    %v216 = vrot.slane %v215, 4
    %v217 = vadd.f32 %v215, %v216
    %v218 = vrot.slane %v217, 2
    %v219 = vadd.f32 %v217, %v218
    %v220 = vrot.slane %v219, 1
    %v221 = vadd.f32 %v219, %v220
    %v222 = vadd.f32 %v213, %v214
    %v223 = vrot.slane %v222, 4
    %v224 = vadd.f32 %v222, %v223
    %v225 = vrot.slane %v224, 2
    %v226 = vadd.f32 %v224, %v225
    %v227 = vrot.slane %v226, 1
    %v228 = vadd.f32 %v226, %v227
    %v229 = vmul.f32 %v221, 0.0625
    %v230 = vmul.f32 %v228, 0.0625
    %v231 = vmul.f32 %v229, %v229
    %v232 = vsub.f32 %v230, %v231
    %v233 = vmax.f32 %v232, 0.0
    %v234 = vadd.f32 %v233, 1e-05
    %v235 = vrsqrt.pop %v234
    %v236 = vmul.f32 %v235, %v234
    %v237 = vmul.f32 %v236, %v235
    %v238 = vmul.f32 0.5, %v237
    %v239 = vsub.f32 1.5, %v238
    %v240 = vmul.f32 %v235, %v239
    %vm241 = vweird.f32 %v234
    %vm242 = vweird.f32 %v235
    %vm243 = vmor %vm241, %vm242
    %v244 = vsel %vm243, %v235, %v240
    %v245 = vmul.f32 %v56, %v244
    %v246 = vmul.f32 %v229, %v245
    %v248 = vrot.slane %v246, 7
    %v250 = vsub.f32 %v56, %v248
    %v251 = vperm.slane %v245, 2
    %v252 = vmul.f32 %v209, %v251
    %v253 = vmul.f32 %v211, %v251
    %v254 = vperm.slane %v250, 3
    %v255 = vadd.f32 %v252, %v254
    %v256 = vadd.f32 %v253, %v254
    %v257 = vtanh.pop %v255
    %v258 = vtanh.pop %v256
    %v259 = vpack.c.bf16 %v258, %v257
    %v260 = vld [vmem:[#allocation5] sm:$0xf]
    %v261 = vld [vmem:[#allocation5 + $0x4] sm:$0xf]
    %v262 = vld [vmem:[#allocation5 + $0x8] sm:$0xf]
    %v263 = vld [vmem:[#allocation5 + $0xc] sm:$0xf]
    %v264 = vld [vmem:[#allocation5 + $0x10] sm:$0xf]
    %v265 = vld [vmem:[#allocation5 + $0x14] sm:$0xf]
    %v266 = vld [vmem:[#allocation5 + $0x18] sm:$0xf]
    %v267 = vld [vmem:[#allocation5 + $0x1c] sm:$0xf]
    %v268 = vld [vmem:[#allocation5 + $0x20] sm:$0xf]
    %v269 = vld [vmem:[#allocation5 + $0x24] sm:$0xf]
    %v270 = vld [vmem:[#allocation5 + $0x28] sm:$0xf]
    %v271 = vld [vmem:[#allocation5 + $0x2c] sm:$0xf]
    %v272 = vld [vmem:[#allocation5 + $0x30] sm:$0xf]
    %v273 = vld [vmem:[#allocation5 + $0x34] sm:$0xf]
    %v274 = vld [vmem:[#allocation5 + $0x38] sm:$0xf]
    %v275 = vld [vmem:[#allocation5 + $0x3c] sm:$0xf]
    %v292 = vunpack.c.l.b16 %v260
    %v293 = vunpack.c.l.b16 %v261
    %v294 = vunpack.c.l.b16 %v262
    %v295 = vunpack.c.l.b16 %v263
    %v296 = vunpack.c.l.b16 %v264
    %v297 = vunpack.c.l.b16 %v265
    %v298 = vunpack.c.l.b16 %v266
    %v299 = vunpack.c.l.b16 %v267
    %v300 = vunpack.c.l.b16 %v268
    %v301 = vunpack.c.l.b16 %v269
    %v302 = vunpack.c.l.b16 %v270
    %v303 = vunpack.c.l.b16 %v271
    %v304 = vunpack.c.l.b16 %v272
    %v305 = vunpack.c.l.b16 %v273
    %v306 = vunpack.c.l.b16 %v274
    %v307 = vunpack.c.l.b16 %v275
    %v308 = vpack.c.b16 %v293, %v292
    %v309 = vpack.c.b16 %v295, %v294
    %v310 = vpack.c.b16 %v297, %v296
    %v311 = vpack.c.b16 %v299, %v298
    %v312 = vpack.c.b16 %v301, %v300
    %v313 = vpack.c.b16 %v303, %v302
    %v314 = vpack.c.b16 %v305, %v304
    %v315 = vpack.c.b16 %v307, %v306
    %324 = vmatpush.bf16.msra.mxu0 %v315
    %325 = vmatpush.bf16.msra.mxu0 %v314
    %326 = vmatpush.bf16.msra.mxu0 %v313
    %327 = vmatpush.bf16.msra.mxu0 %v312
    %328 = vmatpush.bf16.msra.mxu0 %v311
    %329 = vmatpush.bf16.msra.mxu0 %v310
    %330 = vmatpush.bf16.msra.mxu0 %v309
    %331 = vmatpush.bf16.msra.mxu0 %v308
    %332 = vmatmul.bf16.gmra.mxu0 %v259
    %v333 = vpop.f32.mrf.mxu0
    %v334 = vadd.f32 0.0, %v333
    %v335 = vpop.f32.mrf.mxu0
    %v336 = vadd.f32 0.0, %v335
    %337 = vdwg.mxu0
    %v338 = vmul.f32 %v334, %v334
    %v339 = vmul.f32 %v336, %v336
    %v340 = vadd.f32 %v334, %v336
    %v341 = vrot.slane %v340, 4
    %v342 = vadd.f32 %v340, %v341
    %v343 = vrot.slane %v342, 2
    %v344 = vadd.f32 %v342, %v343
    %v345 = vrot.slane %v344, 1
    %v346 = vadd.f32 %v344, %v345
    %v347 = vadd.f32 %v338, %v339
    %v348 = vrot.slane %v347, 4
    %v349 = vadd.f32 %v347, %v348
    %v350 = vrot.slane %v349, 2
    %v351 = vadd.f32 %v349, %v350
    %v352 = vrot.slane %v351, 1
    %v353 = vadd.f32 %v351, %v352
    %v354 = vmul.f32 %v346, 0.0625
    %v355 = vmul.f32 %v353, 0.0625
    %v356 = vmul.f32 %v354, %v354
    %v357 = vsub.f32 %v355, %v356
    %v358 = vmax.f32 %v357, 0.0
    %v359 = vadd.f32 %v358, 1e-05
    %v360 = vrsqrt.pop %v359
    %v361 = vmul.f32 %v360, %v359
    %v362 = vmul.f32 %v361, %v360
    %v363 = vmul.f32 0.5, %v362
    %v364 = vsub.f32 1.5, %v363
    %v365 = vmul.f32 %v360, %v364
    %vm366 = vweird.f32 %v359
    %vm367 = vweird.f32 %v360
    %vm368 = vmor %vm366, %vm367
    %v369 = vsel %vm368, %v360, %v365
    %v370 = vmul.f32 %v56, %v369
    %v371 = vmul.f32 %v354, %v370
    %v373 = vrot.slane %v371, 7
    %v375 = vsub.f32 %v56, %v373
    %v376 = vperm.slane %v370, 4
    %v377 = vmul.f32 %v334, %v376
    %v378 = vmul.f32 %v336, %v376
    %v379 = vperm.slane %v375, 5
    %v380 = vadd.f32 %v377, %v379
    %v381 = vadd.f32 %v378, %v379
    %v382 = vxor.u32 %v380, 2147483648
    %v383 = vxor.u32 %v381, 2147483648
    %v384 = vmul.f32 %v382, 1.442695
    %v385 = vpow.pop %v384
    %v386 = vmul.f32 %v383, 1.442695
    %v387 = vpow.pop %v386
    %v388 = vadd.f32 %v385, 1.0
    %v389 = vadd.f32 %v387, 1.0
    %v390 = vrcp.pop %v388
    %v391 = vmul.f32 %v388, %v390
    %v392 = vsub.f32 1.0, %v391
    %v393 = vmul.f32 %v390, %v392
    %v394 = vadd.f32 %v390, %v393
    %vm395 = vweird.f32 %v388
    %vm396 = vweird.f32 %v390
    %vm397 = vmor %vm395, %vm396
    %v398 = vsel %vm397, %v390, %v394
    %v399 = vand.u32 2147483647, %v388
    %vm400 = vcmp.eq.f32.partialorder %v399, 8.507059e+37
    %v401 = vand.u32 %v388, 2147483648
    %v402 = vor.u32 1.1754944e-38, %v401
    %v403 = vsel %vm400, %v402, %v398
    %v404 = vmul.f32 1.0, %v403
    %v405 = vrcp.pop %v389
    %v406 = vmul.f32 %v389, %v405
    %v407 = vsub.f32 1.0, %v406
    %v408 = vmul.f32 %v405, %v407
    %v409 = vadd.f32 %v405, %v408
    %vm410 = vweird.f32 %v389
    %vm411 = vweird.f32 %v405
    %vm412 = vmor %vm410, %vm411
    %v413 = vsel %vm412, %v405, %v409
    %v414 = vand.u32 2147483647, %v389
    %vm415 = vcmp.eq.f32.partialorder %v414, 8.507059e+37
    %v416 = vand.u32 %v389, 2147483648
    %v417 = vor.u32 1.1754944e-38, %v416
    %v418 = vsel %vm415, %v417, %v413
    %v419 = vmul.f32 1.0, %v418
    %420 = vst [vmem:[#allocation7] sm:$0xff] %v404
    %421 = vst [vmem:[#allocation7 + $0x8] sm:$0xff] %v419
    // Predicated region
    $region30: #{generator_forward.1} parent=1 // pred_check
      _
    $region31: #{generator_forward.1} parent=1 // pred_check_branch
      %423 = sbr.rel (0) target = $region33
    $region32: #{generator_forward.1} parent=1 // pred_region
      %425 = vsyncadd [#allocation4], 0
      %s426 = sshll.u32 [#allocation7], 4
      %s427 = int_to_ptr.vmem [resolvable:$true] %s426
      %s428 = sshll.u32 %s5, 4
      %s429 = int_to_ptr.hbm [resolvable:$true] %s428
      %434 = dma.vmem_to_hbm [thread:$0]  %s427, 256, %s429, [#allocation4], 128, 128, 8
    $region33: #{generator_forward.1} parent=1 // pred_fallthru
      _
    // Predicated region
    $region34: #{generator_forward.1} parent=1 // pred_check
      _
    $region35: #{generator_forward.1} parent=1 // pred_check_branch
      %436 = sbr.rel (0) target = $region37
    $region36: #{generator_forward.1} parent=1 // pred_region
      %438 = dma.done [#allocation4], 256
    $region37: #{generator_forward.1} parent=1 // pred_fallthru
      _
    %439 = vsyncpa [#allocation3], 1
    %440 = vsyncpa [#allocation6], 1
    %441 = vsyncpa [#allocation4], 1

</llo_original>
